<compile_context>
chip_gen: v5e
topology: v5e:2x2
jax: 0.10.0
libtpu: 0.0.40
codegen_flags: <defaults>
</compile_context>

<pallas_src>
import functools

import jax
import jax.numpy as jnp
from jax import lax
from jax.experimental import pallas as pl
from jax.experimental.pallas import tpu as pltpu

LN_EPS = 1e-12
_MIB = 1024 * 1024


def _round_up(x, m):
    return ((x + m - 1) // m) * m


def _sublane(dtype):
    # rows per sublane tile for this dtype: 8 for 4-byte, 16 for 2-byte, 32 for 1-byte.
    return 8 * max(1, 4 // jnp.dtype(dtype).itemsize)


def _vmem_capacity_bytes():
    """Physical VMEM per TensorCore; falls back to the smallest current generation (v7x, 64 MiB).

    This try/except guards only the hardware-info query -- it never masks kernel/lowering errors.
    """
    try:
        return int(pltpu.get_tpu_info().vmem_capacity_bytes)
    except Exception:
        return 64 * _MIB


def _spec(shape, index_map, buffers):
    """BlockSpec with an explicit buffer count (default Pallas double-buffering when buffers==2)."""
    if buffers == 2:
        return pl.BlockSpec(shape, index_map)
    try:
        return pl.BlockSpec(shape, index_map, pipeline_mode=pl.Buffered(buffers))
    except TypeError:
        # TODO(synk): pipeline_mode=pl.Buffered unsupported on this jax build; default buffering.
        return pl.BlockSpec(shape, index_map)


def bert_output_kernel(x_ref, w_ref, b_ref, gamma_ref, beta_ref, res_ref, o_ref, *, matmul_dtype):
    # x_ref:     (tm, K)  tile of hidden_states rows (caller dtype)
    # w_ref:     (K, H)   dense weight, (in, out) layout (bf16 for MXU, or f32 debug path)
    # b_ref:     (1, H)   dense bias (f32)
    # gamma_ref: (1, H)   LayerNorm weight (f32)
    # beta_ref:  (1, H)   LayerNorm bias (f32)
    # res_ref:   (tm, H)  residual (input_tensor) tile
    # o_ref:     (tm, H)  output tile
    x = x_ref[...]
    if matmul_dtype is not None:
        # Cast in VMEM right before the MXU op -- avoids a separate wrapper-side HBM pass over x.
        x = x.astype(matmul_dtype)
    h = jnp.dot(x, w_ref[...], preferred_element_type=jnp.float32)
    h = h + b_ref[...].astype(jnp.float32)
    # TODO(synk): dropout is identity in eval mode; training-mode dropout mask not implemented.
    h = h + res_ref[...].astype(jnp.float32)

    # Centered two-pass LayerNorm statistics (matches torch.nn.LayerNorm numerics, eps=1e-12 in f32).
    inv_h = 1.0 / h.shape[-1]
    mean = jnp.sum(h, axis=-1, keepdims=True) * inv_h
    c = h - mean
    var = jnp.sum(c * c, axis=-1, keepdims=True) * inv_h
    norm = c * lax.rsqrt(var + LN_EPS)
    o_ref[...] = (norm * gamma_ref[...] + beta_ref[...]).astype(o_ref.dtype)


def bert_output(hidden_states, input_tensor, w, b, gamma, beta, *,
                tile_m=None, matmul_dtype=jnp.bfloat16, stream_buffers=None):
    """hidden_states: (B, S, K); input_tensor: (B, S, H) -> (B, S, H).

    matmul_dtype: MXU operand dtype (bf16 production path; None keeps the caller dtype, exact f32).
    The output dtype follows input_tensor (pass bf16 activations to halve the residual/output streams).
    """
    B, S, K = hidden_states.shape
    H = input_tensor.shape[-1]
    M = B * S
    out_dtype = input_tensor.dtype

    # Free reshapes only -- no pad, no eager astype of the big streams.
    x2 = hidden_states.reshape(M, K)
    r2 = input_tensor.reshape(M, H)
    # The weight is tiny relative to the x stream and stays resident: a one-time wrapper cast is
    # cheaper than re-casting (and holding f32) every grid step.
    wm = w if matmul_dtype is None else w.astype(matmul_dtype)
    b2 = b.reshape(1, H).astype(jnp.float32)
    g2 = gamma.reshape(1, H).astype(jnp.float32)
    be2 = beta.reshape(1, H).astype(jnp.float32)

    x_item = jnp.dtype(x2.dtype).itemsize
    w_item = jnp.dtype(wm.dtype).itemsize
    r_item = jnp.dtype(r2.dtype).itemsize
    o_item = jnp.dtype(out_dtype).itemsize

    # Row tile: sublane-aligned, capped at 512, and small enough that the grid has >= 4 steps
    # when M allows (so the "parallel" axis can shard across both v7x TensorCores).
    row_align = max(_sublane(x2.dtype), _sublane(r2.dtype), _sublane(out_dtype))
    if tile_m is None:
        tile_m = min(512, max(row_align, _round_up(pl.cdiv(M, 4), row_align)))
    else:
        tile_m = max(row_align, _round_up(tile_m, row_align))
    tile_m = min(tile_m, _round_up(M, row_align))
    num_tiles = pl.cdiv(M, tile_m)  # ragged last block: OOB rows masked by Pallas, no pad / slice

    # VMEM plan & scoped limit, capped below physical capacity (64 MiB v7x, 128 MiB v5e/v6e).
    capacity = _vmem_capacity_bytes()
    cap = max(32 * _MIB, capacity - 16 * _MIB)

    def plan_bytes(nbuf_stream):
        return (nbuf_stream * tile_m * K * x_item          # streamed x row tiles
                + K * H * w_item                           # resident weight (single buffer)
                + nbuf_stream * tile_m * H * r_item        # streamed residual row tiles
                + 2 * tile_m * H * o_item                  # output row tiles
                + 3 * H * 4                                # bias / gamma / beta
                + tile_m * (K + 4 * H) * 4)                # in-kernel f32 temporaries headroom

    if stream_buffers is None:
        # Deeper prefetch only where VMEM is plentiful (v5e/v6e 128 MiB); stay at 2 on v7x (64 MiB).
        stream_buffers = 3 if (capacity >= 96 * _MIB and plan_bytes(3) <= cap - 8 * _MIB) else 2
    vmem_limit = int(min(max(plan_bytes(stream_buffers) + 8 * _MIB, 32 * _MIB), cap))

    cost = pl.CostEstimate(
        flops=2 * M * K * H + 10 * M * H,
        transcendentals=M,  # one rsqrt per row
        bytes_accessed=(M * K * x_item + K * H * w_item + M * H * r_item
                        + M * H * o_item + 3 * H * 4),
    )

    grid_spec = pltpu.PrefetchScalarGridSpec(
        num_scalar_prefetch=0,
        grid=(num_tiles,),
        in_specs=[
            _spec((tile_m, K), lambda i: (i, 0), stream_buffers),   # x rows (streamed)
            _spec((K, H), lambda i: (0, 0), 1),                     # dense weight (resident)
            _spec((1, H), lambda i: (0, 0), 1),                     # dense bias
            _spec((1, H), lambda i: (0, 0), 1),                     # LN gamma
            _spec((1, H), lambda i: (0, 0), 1),                     # LN beta
            _spec((tile_m, H), lambda i: (i, 0), stream_buffers),   # residual rows (streamed)
        ],
        out_specs=pl.BlockSpec((tile_m, H), lambda i: (i, 0)),
    )

    out2 = pl.pallas_call(
        functools.partial(bert_output_kernel, matmul_dtype=matmul_dtype),
        out_shape=jax.ShapeDtypeStruct((M, H), out_dtype),
        grid_spec=grid_spec,
        compiler_params=pltpu.CompilerParams(
            dimension_semantics=("parallel",),
            vmem_limit_bytes=vmem_limit,
        ),
        cost_estimate=cost,
    )(x2, wm, b2, g2, be2, r2)

    return out2.reshape(B, S, H)


def reference(hidden_states, input_tensor, w, b, gamma, beta):
    h = hidden_states.astype(jnp.float32) @ w.astype(jnp.float32) + b.astype(jnp.float32)
    h = h + input_tensor.astype(jnp.float32)
    mean = jnp.mean(h, axis=-1, keepdims=True)
    var = jnp.mean((h - mean) ** 2, axis=-1, keepdims=True)
    return ((h - mean) / jnp.sqrt(var + LN_EPS)) * gamma + beta


if __name__ == "__main__":
    # Small config: intermediate_size=64, hidden_size=32, batch=2, seq=8.
    B, S, K, H = 2, 8, 64, 32

    key = jax.random.PRNGKey(0)
    k1, k2, k3, k4 = jax.random.split(key, 4)

    hidden_states = jax.random.normal(k1, (B, S, K), dtype=jnp.float32)
    input_tensor = jax.random.normal(k2, (B, S, H), dtype=jnp.float32)

    # nn.Linear weight is (H, K); stored here pre-transposed as (K, H).
    w = jax.random.normal(k3, (K, H), dtype=jnp.float32) * (1.0 / jnp.sqrt(K))
    b = jax.random.normal(k4, (H,), dtype=jnp.float32) * 0.01
    gamma = jnp.ones((H,), dtype=jnp.float32)   # LayerNorm weight init
    beta = jnp.zeros((H,), dtype=jnp.float32)   # LayerNorm bias init

    ref = reference(hidden_states, input_tensor, w, b, gamma, beta)

    # Exact-numerics (debug) path: f32 MXU operands, default tiling -> multi-step grid.
    out_f32 = jax.block_until_ready(
        bert_output(hidden_states, input_tensor, w, b, gamma, beta, matmul_dtype=None))
    assert out_f32.shape == (B, S, H)
    assert jnp.allclose(out_f32, ref, atol=1e-5, rtol=1e-5), "f32 path mismatch vs reference"

    # Production path: bf16 MXU operands cast in-kernel; oversized tile_m is clamped to row count.
    out_bf16 = jax.block_until_ready(
        bert_output(hidden_states, input_tensor, w, b, gamma, beta, tile_m=128))
    assert out_bf16.shape == (B, S, H)
    assert jnp.allclose(out_bf16, ref, atol=5e-2, rtol=5e-2), "bf16 path mismatch vs reference"

    # Ragged rows: M=18 with tile_m=8 -> 3 grid steps, last block masked by Pallas (no pad/slice).
    S2 = 9
    hs2 = jax.random.normal(k1, (B, S2, K), dtype=jnp.float32)
    it2 = jax.random.normal(k2, (B, S2, H), dtype=jnp.float32)
    ref2 = reference(hs2, it2, w, b, gamma, beta)
    out_rag = jax.block_until_ready(
        bert_output(hs2, it2, w, b, gamma, beta, tile_m=8, matmul_dtype=None))
    assert out_rag.shape == (B, S2, H)
    assert jnp.allclose(out_rag, ref2, atol=1e-5, rtol=1e-5), "ragged-rows path mismatch vs reference"

    print("KERNEL_OK")
</pallas_src>

<mosaic_0001>
module attributes {stable_mosaic.version = 11 : i64} {
  func.func @bert_output_kernel(%arg0: i32, %arg1: memref<8x64xf32, #tpu.memory_space<vmem>>, %arg2: memref<64x32xf32, #tpu.memory_space<vmem>>, %arg3: memref<1x32xf32, #tpu.memory_space<vmem>>, %arg4: memref<1x32xf32, #tpu.memory_space<vmem>>, %arg5: memref<1x32xf32, #tpu.memory_space<vmem>>, %arg6: memref<8x32xf32, #tpu.memory_space<vmem>>, %arg7: memref<8x32xf32, #tpu.memory_space<vmem>>) attributes {dimension_semantics = [#tpu.dimension_semantics<parallel>], iteration_bounds = array<i64: 2>, scalar_prefetch = 0 : i64, scratch_operands = 0 : i64, tpu.core_type = #tpu.core_type<tc>, window_params = [{transform_indices = @transform_0, window_bounds = array<i64: 8, 64>}, {pipeline_mode = #tpu.pipeline_mode<synchronous>, transform_indices = @transform_1, window_bounds = array<i64: 64, 32>}, {pipeline_mode = #tpu.pipeline_mode<synchronous>, transform_indices = @transform_2, window_bounds = array<i64: 1, 32>}, {pipeline_mode = #tpu.pipeline_mode<synchronous>, transform_indices = @transform_3, window_bounds = array<i64: 1, 32>}, {pipeline_mode = #tpu.pipeline_mode<synchronous>, transform_indices = @transform_4, window_bounds = array<i64: 1, 32>}, {transform_indices = @transform_5, window_bounds = array<i64: 8, 32>}, {transform_indices = @transform_6, window_bounds = array<i64: 8, 32>}]} {
    %c0 = arith.constant 0 : index
    %c0_0 = arith.constant 0 : index
    %0 = vector.load %arg1[%c0, %c0_0] : memref<8x64xf32, #tpu.memory_space<vmem>>, vector<8x64xf32>
    %c0_1 = arith.constant 0 : index
    %c0_2 = arith.constant 0 : index
    %1 = vector.load %arg2[%c0_1, %c0_2] : memref<64x32xf32, #tpu.memory_space<vmem>>, vector<64x32xf32>
    %cst = arith.constant dense<0.000000e+00> : vector<8x32xf32>
    %2 = tpu.matmul %0, %1, %cst {dimension_numbers = #tpu.dot_dimension_numbers<[1], [0], [0], [1], [0, 0, 1, 1], [], []>} : vector<8x64xf32>, vector<64x32xf32>, vector<8x32xf32> -> vector<8x32xf32>
    %c0_3 = arith.constant 0 : index
    %c0_4 = arith.constant 0 : index
    %3 = vector.load %arg3[%c0_3, %c0_4] : memref<1x32xf32, #tpu.memory_space<vmem>>, vector<1x32xf32>
    %4 = vector.broadcast %3 : vector<1x32xf32> to vector<8x32xf32>
    %5 = arith.addf %2, %4 : vector<8x32xf32>
    %c0_5 = arith.constant 0 : index
    %c0_6 = arith.constant 0 : index
    %6 = vector.load %arg6[%c0_5, %c0_6] : memref<8x32xf32, #tpu.memory_space<vmem>>, vector<8x32xf32>
    %7 = arith.addf %5, %6 : vector<8x32xf32>
    %cst_7 = arith.constant dense<0.000000e+00> : vector<8xf32>
    %8 = vector.multi_reduction <add>, %7, %cst_7 [1] : vector<8x32xf32> to vector<8xf32>
    %9 = vector.shape_cast %8 : vector<8xf32> to vector<8x1xf32>
    %cst_8 = arith.constant 3.125000e-02 : f32
    %10 = vector.broadcast %cst_8 : f32 to vector<8x1xf32>
    %11 = arith.mulf %9, %10 : vector<8x1xf32>
    %12 = vector.broadcast %11 : vector<8x1xf32> to vector<8x32xf32>
    %13 = arith.subf %7, %12 : vector<8x32xf32>
    %14 = arith.mulf %13, %13 : vector<8x32xf32>
    %cst_9 = arith.constant dense<0.000000e+00> : vector<8xf32>
    %15 = vector.multi_reduction <add>, %14, %cst_9 [1] : vector<8x32xf32> to vector<8xf32>
    %16 = vector.shape_cast %15 : vector<8xf32> to vector<8x1xf32>
    %cst_10 = arith.constant 3.125000e-02 : f32
    %17 = vector.broadcast %cst_10 : f32 to vector<8x1xf32>
    %18 = arith.mulf %16, %17 : vector<8x1xf32>
    %cst_11 = arith.constant 9.99999996E-13 : f32
    %19 = vector.broadcast %cst_11 : f32 to vector<8x1xf32>
    %20 = arith.addf %18, %19 : vector<8x1xf32>
    %21 = math.rsqrt %20 : vector<8x1xf32>
    %22 = vector.broadcast %21 : vector<8x1xf32> to vector<8x32xf32>
    %23 = arith.mulf %13, %22 : vector<8x32xf32>
    %c0_12 = arith.constant 0 : index
    %c0_13 = arith.constant 0 : index
    %24 = vector.load %arg4[%c0_12, %c0_13] : memref<1x32xf32, #tpu.memory_space<vmem>>, vector<1x32xf32>
    %25 = vector.broadcast %24 : vector<1x32xf32> to vector<8x32xf32>
    %26 = arith.mulf %23, %25 : vector<8x32xf32>
    %c0_14 = arith.constant 0 : index
    %c0_15 = arith.constant 0 : index
    %27 = vector.load %arg5[%c0_14, %c0_15] : memref<1x32xf32, #tpu.memory_space<vmem>>, vector<1x32xf32>
    %28 = vector.broadcast %27 : vector<1x32xf32> to vector<8x32xf32>
    %29 = arith.addf %26, %28 : vector<8x32xf32>
    %c0_16 = arith.constant 0 : index
    %c0_17 = arith.constant 0 : index
    %30 = vector.load %arg7[%c0_16, %c0_17] : memref<8x32xf32, #tpu.memory_space<vmem>>, vector<8x32xf32>
    tpu.vector_store %arg7[%c0_16, %c0_17], %29 {strides = array<i32>} : memref<8x32xf32, #tpu.memory_space<vmem>>, vector<8x32xf32>,
    return
  }
  func.func @transform_0(%arg0: i32) -> (i32, i32) {
    %c0_i32 = arith.constant 0 : i32
    %c0_i32_0 = arith.constant 0 : i32
    return %arg0, %c0_i32 : i32, i32
  }
  func.func @transform_1(%arg0: i32) -> (i32, i32) {
    %c0_i32 = arith.constant 0 : i32
    %c0_i32_0 = arith.constant 0 : i32
    %c0_i32_1 = arith.constant 0 : i32
    return %c0_i32, %c0_i32_0 : i32, i32
  }
  func.func @transform_2(%arg0: i32) -> (i32, i32) {
    %c0_i32 = arith.constant 0 : i32
    %c0_i32_0 = arith.constant 0 : i32
    %c0_i32_1 = arith.constant 0 : i32
    return %c0_i32, %c0_i32_0 : i32, i32
  }
  func.func @transform_3(%arg0: i32) -> (i32, i32) {
    %c0_i32 = arith.constant 0 : i32
    %c0_i32_0 = arith.constant 0 : i32
    %c0_i32_1 = arith.constant 0 : i32
    return %c0_i32, %c0_i32_0 : i32, i32
  }
  func.func @transform_4(%arg0: i32) -> (i32, i32) {
    %c0_i32 = arith.constant 0 : i32
    %c0_i32_0 = arith.constant 0 : i32
    %c0_i32_1 = arith.constant 0 : i32
    return %c0_i32, %c0_i32_0 : i32, i32
  }
  func.func @transform_5(%arg0: i32) -> (i32, i32) {
    %c0_i32 = arith.constant 0 : i32
    %c0_i32_0 = arith.constant 0 : i32
    return %arg0, %c0_i32 : i32, i32
  }
  func.func @transform_6(%arg0: i32) -> (i32, i32) {
    %c0_i32 = arith.constant 0 : i32
    %c0_i32_0 = arith.constant 0 : i32
    return %arg0, %c0_i32 : i32, i32
  }
}

</mosaic_0001>

<llo_original>
// kernel: tpu_custom_call.1
$region0: #{tpu_custom_call.1}
  #allocation0 [shape = 'u32[]', space=smem, size = 0x4, offset = 0x4, fixed_abs, tag = 'smem constant byte address 0x4 - core index']
  #allocation1 [shape = 'u32[72,128]{1,0:T(1,128)}', space=vmem, size = 0x9000, scoped, tag = 'internal scratch']
  %s0 = inlined_call_operand.vmem [shape: f32[16,64], index: 0, kind: input, shape index: {}]
  %s1 = inlined_call_operand.vmem [shape: f32[64,32], index: 1, kind: input, shape index: {}]
  %s2 = inlined_call_operand.vmem [shape: f32[1,32], index: 2, kind: input, shape index: {}]
  %s3 = inlined_call_operand.vmem [shape: f32[1,32], index: 3, kind: input, shape index: {}]
  %s4 = inlined_call_operand.vmem [shape: f32[1,32], index: 4, kind: input, shape index: {}]
  %s5 = inlined_call_operand.vmem [shape: f32[16,32], index: 5, kind: input, shape index: {}]
  %s6 = inlined_call_operand.hbm [shape: f32[16,32], index: 6, kind: output, shape index: {}]
  %s7 = sld [smem:[#allocation0]]
  $region57: #{tpu_custom_call.1} parent=0
    _
  %s9 = ssub.s32 1, %s7
  %s10 = scalar_select 0, %s9, %s7
  $region1: #{tpu_custom_call.1} parent=0
    #allocation2 [shape = 'u8[8192]{0}', space=vmem, size = 0x2000, scoped, tag = 'output window, operand 0']
    #allocation3 [shape = 's32[2]{0}', space=sflag, size = 0x8, scoped, tag = 'scoped memory for tpu_custom_call.1']
    %11 = vsyncpa [#allocation3], 0
    %s12 = scalar_lea.sflag [#allocation3], 1
    %13 = vsyncpa %s12, 0
    loop: start=0, step=1, limit=4
    $region2: #{tpu_custom_call.1} parent=1 // loop_pre_header
      _
    $region3: #{tpu_custom_call.1} parent=1 // loop_header
      %s15 = sphi 0, %s19
      %p16 = scmp.ge.s32.totalorder %s15, 4
      %s25 = sphi 0, %s27
      %s28 = sphi 0, %s25
      %s29 = sphi 0, %s28
      %s45 = sphi 0, %s29
      %s49 = sphi 0, %s49
      %s51 = sphi 0, %s49
      %s52 = sphi 0, %s51
      %s66 = sphi 0, %s52
      %s70 = sphi 0, %s70
      %s72 = sphi 0, %s70
      %s73 = sphi 0, %s72
      %s87 = sphi 0, %s73
      %s91 = sphi 0, %s91
      %s93 = sphi 0, %s91
      %s94 = sphi 0, %s93
      %s108 = sphi 0, %s94
      %s112 = sphi 0, %s112
      %s114 = sphi 0, %s112
      %s115 = sphi 0, %s114
      %s129 = sphi 0, %s115
      %s135 = sphi 0, %s137
      %s138 = sphi 0, %s135
      %s139 = sphi 0, %s138
      %s155 = sphi 0, %s139
      %s161 = sphi 0, %s163
      %s164 = sphi 0, %s161
      %s165 = sphi 0, %s164
      %s181 = sphi 0, %s165
    $region4: #{tpu_custom_call.1} parent=1 // loop_header_branch
      %18 = sbr.rel (%p16) target = $region8
    $region5: #{tpu_custom_call.1} parent=1 // loop_body
      %s20 = ssub.s32 %s15, 1
      %s21 = ssub.s32 %s15, 2
      %s22 = sadd.s32 %s15, 1
      %s23 = ssub.s32 %s15, %s22
      %p24 = scmp.eq.s32.totalorder %s23, 0
      %s26 = sadd.s32 %s25, 1
      %s27 = scalar_select %p24, %s25, %s26
      %p30 = pneg %p24
      %p31 = scmp.eq.s32.totalorder %s15, 1
      %p32 = por %p30, %p31
      %p33 = scmp.ne.s32.totalorder %s25, %s28
      %p34 = scmp.eq.s32.totalorder %s15, 0
      %p35 = por %p33, %p34
      %p36 = scmp.ne.s32.totalorder %s25, %s28
      %p37 = scmp.eq.s32.totalorder %s20, 1
      %p38 = por %p36, %p37
      %p39 = scmp.ne.s32.totalorder %s28, %s29
      %p40 = scmp.eq.s32.totalorder %s20, 0
      %p41 = por %p39, %p40
      %p42 = scmp.ne.s32.totalorder %s28, %s29
      %p43 = scmp.eq.s32.totalorder %s21, 1
      %p44 = por %p42, %p43
      %p46 = scmp.ne.s32.totalorder %s29, %s45
      %p47 = scmp.eq.s32.totalorder %s21, 0
      %p48 = por %p46, %p47
      %s50 = sadd.s32 %s49, 1
      %p53 = scmp.eq.s32.totalorder %s15, 1
      %p54 = scmp.ne.s32.totalorder %s49, %s51
      %p55 = scmp.eq.s32.totalorder %s15, 0
      %p56 = por %p54, %p55
      %p57 = scmp.ne.s32.totalorder %s49, %s51
      %p58 = scmp.eq.s32.totalorder %s20, 1
      %p59 = por %p57, %p58
      %p60 = scmp.ne.s32.totalorder %s51, %s52
      %p61 = scmp.eq.s32.totalorder %s20, 0
      %p62 = por %p60, %p61
      %p63 = scmp.ne.s32.totalorder %s51, %s52
      %p64 = scmp.eq.s32.totalorder %s21, 1
      %p65 = por %p63, %p64
      %p67 = scmp.ne.s32.totalorder %s52, %s66
      %p68 = scmp.eq.s32.totalorder %s21, 0
      %p69 = por %p67, %p68
      %s71 = sadd.s32 %s70, 1
      %p74 = scmp.eq.s32.totalorder %s15, 1
      %p75 = scmp.ne.s32.totalorder %s70, %s72
      %p76 = scmp.eq.s32.totalorder %s15, 0
      %p77 = por %p75, %p76
      %p78 = scmp.ne.s32.totalorder %s70, %s72
      %p79 = scmp.eq.s32.totalorder %s20, 1
      %p80 = por %p78, %p79
      %p81 = scmp.ne.s32.totalorder %s72, %s73
      %p82 = scmp.eq.s32.totalorder %s20, 0
      %p83 = por %p81, %p82
      %p84 = scmp.ne.s32.totalorder %s72, %s73
      %p85 = scmp.eq.s32.totalorder %s21, 1
      %p86 = por %p84, %p85
      %p88 = scmp.ne.s32.totalorder %s73, %s87
      %p89 = scmp.eq.s32.totalorder %s21, 0
      %p90 = por %p88, %p89
      %s92 = sadd.s32 %s91, 1
      %p95 = scmp.eq.s32.totalorder %s15, 1
      %p96 = scmp.ne.s32.totalorder %s91, %s93
      %p97 = scmp.eq.s32.totalorder %s15, 0
      %p98 = por %p96, %p97
      %p99 = scmp.ne.s32.totalorder %s91, %s93
      %p100 = scmp.eq.s32.totalorder %s20, 1
      %p101 = por %p99, %p100
      %p102 = scmp.ne.s32.totalorder %s93, %s94
      %p103 = scmp.eq.s32.totalorder %s20, 0
      %p104 = por %p102, %p103
      %p105 = scmp.ne.s32.totalorder %s93, %s94
      %p106 = scmp.eq.s32.totalorder %s21, 1
      %p107 = por %p105, %p106
      %p109 = scmp.ne.s32.totalorder %s94, %s108
      %p110 = scmp.eq.s32.totalorder %s21, 0
      %p111 = por %p109, %p110
      %s113 = sadd.s32 %s112, 1
      %p116 = scmp.eq.s32.totalorder %s15, 1
      %p117 = scmp.ne.s32.totalorder %s112, %s114
      %p118 = scmp.eq.s32.totalorder %s15, 0
      %p119 = por %p117, %p118
      %p120 = scmp.ne.s32.totalorder %s112, %s114
      %p121 = scmp.eq.s32.totalorder %s20, 1
      %p122 = por %p120, %p121
      %p123 = scmp.ne.s32.totalorder %s114, %s115
      %p124 = scmp.eq.s32.totalorder %s20, 0
      %p125 = por %p123, %p124
      %p126 = scmp.ne.s32.totalorder %s114, %s115
      %p127 = scmp.eq.s32.totalorder %s21, 1
      %p128 = por %p126, %p127
      %p130 = scmp.ne.s32.totalorder %s115, %s129
      %p131 = scmp.eq.s32.totalorder %s21, 0
      %p132 = por %p130, %p131
      %s133 = ssub.s32 %s15, %s22
      %p134 = scmp.eq.s32.totalorder %s133, 0
      %s136 = sadd.s32 %s135, 1
      %s137 = scalar_select %p134, %s135, %s136
      %p140 = pneg %p134
      %p141 = scmp.eq.s32.totalorder %s15, 1
      %p142 = por %p140, %p141
      %p143 = scmp.ne.s32.totalorder %s135, %s138
      %p144 = scmp.eq.s32.totalorder %s15, 0
      %p145 = por %p143, %p144
      %p146 = scmp.ne.s32.totalorder %s135, %s138
      %p147 = scmp.eq.s32.totalorder %s20, 1
      %p148 = por %p146, %p147
      %p149 = scmp.ne.s32.totalorder %s138, %s139
      %p150 = scmp.eq.s32.totalorder %s20, 0
      %p151 = por %p149, %p150
      %p152 = scmp.ne.s32.totalorder %s138, %s139
      %p153 = scmp.eq.s32.totalorder %s21, 1
      %p154 = por %p152, %p153
      %p156 = scmp.ne.s32.totalorder %s139, %s155
      %p157 = scmp.eq.s32.totalorder %s21, 0
      %p158 = por %p156, %p157
      %s159 = ssub.s32 %s15, %s22
      %p160 = scmp.eq.s32.totalorder %s159, 0
      %s162 = sadd.s32 %s161, 1
      %s163 = scalar_select %p160, %s161, %s162
      %p166 = pneg %p160
      %p167 = scmp.eq.s32.totalorder %s15, 1
      %p168 = por %p166, %p167
      %p169 = scmp.ne.s32.totalorder %s161, %s164
      %p170 = scmp.eq.s32.totalorder %s15, 0
      %p171 = por %p169, %p170
      %p172 = scmp.ne.s32.totalorder %s161, %s164
      %p173 = scmp.eq.s32.totalorder %s20, 1
      %p174 = por %p172, %p173
      %p175 = scmp.ne.s32.totalorder %s164, %s165
      %p176 = scmp.eq.s32.totalorder %s20, 0
      %p177 = por %p175, %p176
      %p178 = scmp.ne.s32.totalorder %s164, %s165
      %p179 = scmp.eq.s32.totalorder %s21, 1
      %p180 = por %p178, %p179
      %p182 = scmp.ne.s32.totalorder %s165, %s181
      %p183 = scmp.eq.s32.totalorder %s21, 0
      %p184 = por %p182, %p183
      %p185 = scmp.le.s32.totalorder 1, %s15
      %p186 = scmp.lt.s32.totalorder %s15, 3
      %p187 = pnand %p185, %p186
      %p188 = pneg %p187
      // Predicated region
      $region9: #{tpu_custom_call.1} parent=5 // pred_check
        _
      $region10: #{tpu_custom_call.1} parent=5 // pred_check_branch
        %190 = sbr.rel (%p187) target = $region12
      $region11: #{tpu_custom_call.1} parent=5 // pred_region
        %s191 = ssub.s32 %s15, 1
        // Predicated region
        $region13: #{tpu_custom_call.1} parent=11 // pred_check
          %p192 = pneg %p62
        $region14: #{tpu_custom_call.1} parent=11 // pred_check_branch
          %194 = sbr.rel (%p192) target = $region16
        $region15: #{tpu_custom_call.1} parent=11 // pred_region
          _
        $region16: #{tpu_custom_call.1} parent=11 // pred_fallthru
          _
        // Predicated region
        $region17: #{tpu_custom_call.1} parent=11 // pred_check
          %p195 = pneg %p83
        $region18: #{tpu_custom_call.1} parent=11 // pred_check_branch
          %197 = sbr.rel (%p195) target = $region20
        $region19: #{tpu_custom_call.1} parent=11 // pred_region
          _
        $region20: #{tpu_custom_call.1} parent=11 // pred_fallthru
          _
        // Predicated region
        $region21: #{tpu_custom_call.1} parent=11 // pred_check
          %p198 = pneg %p104
        $region22: #{tpu_custom_call.1} parent=11 // pred_check_branch
          %200 = sbr.rel (%p198) target = $region24
        $region23: #{tpu_custom_call.1} parent=11 // pred_region
          _
        $region24: #{tpu_custom_call.1} parent=11 // pred_fallthru
          _
        // Predicated region
        $region25: #{tpu_custom_call.1} parent=11 // pred_check
          %p201 = pneg %p125
        $region26: #{tpu_custom_call.1} parent=11 // pred_check_branch
          %203 = sbr.rel (%p201) target = $region28
        $region27: #{tpu_custom_call.1} parent=11 // pred_region
          _
        $region28: #{tpu_custom_call.1} parent=11 // pred_fallthru
          _
      $region12: #{tpu_custom_call.1} parent=5 // pred_fallthru
        _
      %p204 = scmp.lt.s32.totalorder %s15, 2
      // Predicated region
      $region29: #{tpu_custom_call.1} parent=5 // pred_check
        %p205 = pneg %p204
      $region30: #{tpu_custom_call.1} parent=5 // pred_check_branch
        %207 = sbr.rel (%p205) target = $region32
      $region31: #{tpu_custom_call.1} parent=5 // pred_region
        // Predicated region
        $region33: #{tpu_custom_call.1} parent=31 // pred_check
          %p208 = pneg %p35
        $region34: #{tpu_custom_call.1} parent=31 // pred_check_branch
          %210 = sbr.rel (%p208) target = $region36
        $region35: #{tpu_custom_call.1} parent=31 // pred_region
          %p211 = scmp.lt.s32.totalorder %s15, 1
          %s212 = scalar_select %p211, %s15, 1
          %s213 = smul.addr %s212, 8
          %s214 = scalar_lea.vmem %s0, %s213
        $region36: #{tpu_custom_call.1} parent=31 // pred_fallthru
          _
        // Predicated region
        $region37: #{tpu_custom_call.1} parent=31 // pred_check
          %p215 = pneg %p145
        $region38: #{tpu_custom_call.1} parent=31 // pred_check_branch
          %217 = sbr.rel (%p215) target = $region40
        $region39: #{tpu_custom_call.1} parent=31 // pred_region
          %p218 = scmp.lt.s32.totalorder %s15, 1
          %s219 = scalar_select %p218, %s15, 1
          %s220 = smul.addr %s219, 8
          %s221 = scalar_lea.vmem %s5, %s220
        $region40: #{tpu_custom_call.1} parent=31 // pred_fallthru
          _
      $region32: #{tpu_custom_call.1} parent=5 // pred_fallthru
        _
      %p222 = scmp.le.s32.totalorder 1, %s15
      %p223 = scmp.lt.s32.totalorder %s15, 3
      %p224 = pnand %p222, %p223
      %p225 = pneg %p224
      // Predicated region
      $region41: #{tpu_custom_call.1} parent=5 // pred_check
        _
      $region42: #{tpu_custom_call.1} parent=5 // pred_check_branch
        %227 = sbr.rel (%p224) target = $region44
      $region43: #{tpu_custom_call.1} parent=5 // pred_region
        %s228 = ssub.s32 %s15, 1
        %p229 = scmp.lt.s32.totalorder %s20, 1
        %s230 = scalar_select %p229, %s20, 1
        %s231 = smul.addr %s230, 8
        %s232 = scalar_lea.vmem %s0, %s231
        %p233 = pneg %p41
        %p234 = pneg %p38
        %p235 = pneg %p62
        %p236 = pneg %p59
        %p237 = pneg %p83
        %p238 = pneg %p80
        %p239 = pneg %p104
        %p240 = pneg %p101
        %p241 = pneg %p125
        %p242 = pneg %p122
        %p243 = scmp.lt.s32.totalorder %s20, 1
        %s244 = scalar_select %p243, %s20, 1
        %s245 = smul.addr %s244, 8
        %s246 = scalar_lea.vmem %s5, %s245
        %p247 = pneg %p151
        %p248 = pneg %p148
        %p249 = pneg %p177
        %p250 = pneg %p174
        %s251 = sand.u32 %s164, 1
        %s252 = scalar_lea.sflag [#allocation3], %s251
        %s253 = sand.u32 %s164, 1
        %s254 = smul.addr %s253, 8
        %s255 = scalar_lea.vmem [#allocation2], %s254
        %p256 = scmp.lt.s32.totalorder %s20, 1
        %s257 = scalar_select %p256, %s20, 1
        %s258 = smul.addr %s257, 8
        %s259 = scalar_lea.vmem %s0, %s258
        %p260 = scmp.lt.s32.totalorder %s20, 1
        %s261 = scalar_select %p260, %s20, 1
        %s262 = smul.addr %s261, 8
        %s263 = scalar_lea.vmem %s5, %s262
        %v264 = vld [vmem:[%s259] sm:$0xff]
        %v265 = vld [vmem:[%s1] sm:$0xff]
        %v266 = vld [vmem:[%s1 + $0x8] sm:$0xff]
        %v267 = vld [vmem:[%s1 + $0x10] sm:$0xff]
        %v268 = vld [vmem:[%s1 + $0x18] sm:$0xff]
        %v269 = vld [vmem:[%s1 + $0x20] sm:$0xff]
        %v270 = vld [vmem:[%s1 + $0x28] sm:$0xff]
        %v271 = vld [vmem:[%s1 + $0x30] sm:$0xff]
        %v272 = vld [vmem:[%s1 + $0x38] sm:$0xff]
        %v273 = vld [vmem:[%s2] sm:$0x1]
        %v275 = vperm.slane %v273, 0
        %vm277 = vcmask 523264
        %v279 = vsel %vm277, %v264, 0
        %281 = vmatpush.msra.mxu0 0.0
        %282 = vmatpush.msra.mxu0 0.0
        %283 = vmatpush.msra.mxu0 0.0
        %284 = vmatpush.msra.mxu0 0.0
        %285 = vmatpush.msra.mxu0 0.0
        %286 = vmatpush.msra.mxu0 0.0
        %287 = vmatpush.msra.mxu0 0.0
        %288 = vmatpush.msra.mxu0 0.0
        %289 = vmatpush.msra.mxu0 %v272
        %290 = vmatpush.msra.mxu0 %v271
        %291 = vmatpush.msra.mxu0 %v270
        %292 = vmatpush.msra.mxu0 %v269
        %293 = vmatpush.msra.mxu0 %v268
        %294 = vmatpush.msra.mxu0 %v267
        %295 = vmatpush.msra.mxu0 %v266
        %296 = vmatpush.msra.mxu0 %v265
        %297 = vmatmul.f32.gmra.mxu0 %v279
        %v298 = vpop.f32.mrf.mxu0
        %v299 = vadd.f32 %v275, %v298
        %300 = vdwg.mxu0
        %v301 = vld [vmem:[%s263] sm:$0xff]
        %v302 = vadd.f32 %v299, %v301
        %vm303 = vcmask 261120
        %v304 = vsel %vm303, %v302, 0.0
        %305 = vadd.xlane.f32.xlu0 %v304
        %v306 = vpop.xlane.xlu0 %305
        %v307 = vmul.f32 %v306, 0.03125
        %v308 = vsub.f32 %v302, %v307
        %v309 = vmul.f32 %v308, %v308
        %v310 = vsel %vm303, %v309, 0.0
        %311 = vadd.xlane.f32.xlu0 %v310
        %v312 = vpop.xlane.xlu0 %311
        %v313 = vmul.f32 %v312, 0.03125
        %v314 = vadd.f32 %v313, 1e-12
        %v315 = vrsqrt.pop %v314
        %v316 = vmul.f32 %v315, %v314
        %v317 = vmul.f32 %v316, %v315
        %v318 = vmul.f32 0.5, %v317
        %v319 = vsub.f32 1.5, %v318
        %v320 = vmul.f32 %v315, %v319
        %vm321 = vweird.f32 %v314
        %vm322 = vweird.f32 %v315
        %vm323 = vmor %vm321, %vm322
        %v324 = vsel %vm323, %v315, %v320
        %v325 = vmul.f32 %v308, %v324
        %v326 = vld [vmem:[%s3] sm:$0x1]
        %v328 = vperm.slane %v326, 0
        %v330 = vmul.f32 %v325, %v328
        %v331 = vld [vmem:[%s4] sm:$0x1]
        %v333 = vperm.slane %v331, 0
        %v335 = vadd.f32 %v330, %v333
        %336 = vst.msk [vmem:[%s255] sm:$0xff] %vm303, %v335
        %s337 = sand.u32 %s164, 1
        %s338 = scalar_lea.sflag [#allocation3], %s337
        %s339 = sand.u32 %s164, 1
        %s340 = smul.addr %s339, 8
        %s341 = scalar_lea.vmem [#allocation2], %s340
        // Predicated region
        $region45: #{tpu_custom_call.1} parent=43 // pred_check
          %p342 = pneg %p174
        $region46: #{tpu_custom_call.1} parent=43 // pred_check_branch
          %344 = sbr.rel (%p342) target = $region48
        $region47: #{tpu_custom_call.1} parent=43 // pred_region
          %346 = vsyncadd %s338, 0
          %s347 = smul.addr %s20, 8
          %s348 = scalar_lea.hbm %s6, %s347
          %s350 = sshll.u32 %s341, 4
          %s351 = int_to_ptr.vmem [resolvable:$true] %s350
          %s352 = sshll.u32 %s348, 4
          %s353 = int_to_ptr.hbm [resolvable:$true] %s352
          %355 = dma.vmem_to_hbm [thread:$0]  %s351, 128, %s353, %s338
        $region48: #{tpu_custom_call.1} parent=43 // pred_fallthru
          _
      $region44: #{tpu_custom_call.1} parent=5 // pred_fallthru
        _
      %p356 = scmp.le.s32.totalorder 2, %s15
      // Predicated region
      $region49: #{tpu_custom_call.1} parent=5 // pred_check
        %p357 = pneg %p356
      $region50: #{tpu_custom_call.1} parent=5 // pred_check_branch
        %359 = sbr.rel (%p357) target = $region52
      $region51: #{tpu_custom_call.1} parent=5 // pred_region
        %s360 = ssub.s32 %s15, 2
        // Predicated region
        $region53: #{tpu_custom_call.1} parent=51 // pred_check
          %p361 = pneg %p180
        $region54: #{tpu_custom_call.1} parent=51 // pred_check_branch
          %363 = sbr.rel (%p361) target = $region56
        $region55: #{tpu_custom_call.1} parent=51 // pred_region
          %s364 = sand.u32 %s165, 1
          %s365 = scalar_lea.sflag [#allocation3], %s364
          %s366 = sand.u32 %s165, 1
          %s367 = smul.addr %s366, 8
          %s368 = scalar_lea.vmem [#allocation2], %s367
          %370 = dma.done %s365, 128
        $region56: #{tpu_custom_call.1} parent=51 // pred_fallthru
          _
      $region52: #{tpu_custom_call.1} parent=5 // pred_fallthru
        _
    $region6: #{tpu_custom_call.1} parent=1 // loop_footer
      %s19 = sadd.s32 1, %s15
    $region7: #{tpu_custom_call.1} parent=1 // loop_footer_branch
      %14 = sbr.rel target = $region3
    $region8: #{tpu_custom_call.1} parent=1 // loop_exit
      _
    %371 = vsyncpa [#allocation3], 1
    %s372 = scalar_lea.sflag [#allocation3], 1
    %373 = vsyncpa %s372, 1

</llo_original>
